<compile_context>
chip_gen: v7x
topology: tpu7x:2x2x1
jax: 0.10.0
libtpu: 0.0.40
codegen_flags: <defaults>
</compile_context>

<pallas_src>
import functools
import math

import jax
import jax.numpy as jnp
import numpy as np
from jax import lax
from jax.experimental import pallas as pl
from jax.experimental.pallas import tpu as pltpu


def _cdiv(a, b):
    return -(-a // b)


def _round_up(a, b):
    return _cdiv(a, b) * b


def _tap(xcat, off, tl):
    """xcat[:, off:off+tl] with a static offset.

    Lane-aligned offsets are free aligned slices; otherwise one XLU rotate + aligned slice
    (keeps the VPU / vld slots free)."""
    n = xcat.shape[-1]
    if off == 0 and n == tl:
        return xcat
    if off % 128 == 0:
        return xcat[:, off:off + tl]
    # roll matches jnp.roll: result[i] = xcat[(i - shift) % n]; shift = n - off => x[i + off].
    return pltpu.roll(xcat, n - off, axis=1)[:, :tl]


def _conv1d_kernel(*refs, ksize, dilation, pad_l, hl, hr, tl, l_in, need_mask,
                   groups, c_in_g, c_out_g, grouped, has_l, has_r):
    # refs: [left halo?] main tile [right halo?] weight bias out
    idx = 0
    xl_ref = refs[idx] if has_l else None
    idx += int(has_l)
    xt_ref = refs[idx]
    idx += 1
    xr_ref = refs[idx] if has_r else None
    idx += int(has_r)
    w_ref, b_ref, o_ref = refs[idx], refs[idx + 1], refs[idx + 2]

    j = pl.program_id(1)
    width = hl + tl + hr

    pieces = []
    if xl_ref is not None:
        pieces.append(xl_ref[0])                       # (C_in, hl)
    pieces.append(xt_ref[0])                           # (C_in, tl)
    if xr_ref is not None:
        pieces.append(xr_ref[0])                       # (C_in, hr)
    xcat = pieces[0] if len(pieces) == 1 else jnp.concatenate(pieces, axis=-1)

    if need_mask:
        # Global (unpadded) position of every lane; zero everything outside [0, L).  This
        # realizes the causal / anti-causal zero padding in-kernel and kills the unspecified
        # contents of clamped / partial edge blocks before any arithmetic.
        pos = j * tl - hl + lax.broadcasted_iota(jnp.int32, (1, width), 1)
        xcat = jnp.where((pos >= 0) & (pos < l_in), xcat, jnp.zeros((), xcat.dtype))

    # K dilated taps, built once over the full channel dim (shared across all groups).
    # Offset hl + k*dilation - pad_l >= 0 by construction of hl / hr.
    # TODO(synk): for very large ksize switch to lax.fori_loop(..., unroll=4) to bound trace
    # size and vreg live ranges.
    taps = [_tap(xcat, hl + k * dilation - pad_l, tl) for k in range(ksize)]

    if grouped:
        # One (C_out_g, K*C_in_g) @ (K*C_in_g, TL) MXU matmul per group; result (plus bias)
        # stored straight into its C_out slice -- no full (C_out, TL) concat / extra copy.
        for g in range(groups):
            xg = [t[g * c_in_g:(g + 1) * c_in_g, :] for t in taps]
            xg = xg[0] if ksize == 1 else jnp.concatenate(xg, axis=0)     # (K*C_in_g, TL)
            wg = w_ref[pl.ds(g * c_out_g, c_out_g), :]                    # (C_out_g, K*C_in_g)
            bg = b_ref[pl.ds(g * c_out_g, c_out_g), :]                    # (C_out_g, 1)
            res = jnp.dot(wg, xg, preferred_element_type=jnp.float32) + bg
            o_ref[0, pl.ds(g * c_out_g, c_out_g), :] = res.astype(o_ref.dtype)
    else:
        # Single matmul per tile.  For groups > 1 the weight is block diagonal -- zeros live
        # only in the tiny weight, the activations are never expanded.
        xim = taps[0] if ksize == 1 else jnp.concatenate(taps, axis=0)    # (K*C_in, TL)
        res = jnp.dot(w_ref[...], xim, preferred_element_type=jnp.float32) + b_ref[...]
        o_ref[0] = res.astype(o_ref.dtype)


def custom_conv1d(x, weight, bias, *, padding=0, dilation=1, mode="backward",
                  groups=1, max_tile_l=8192):
    """Equivalent to F.conv1d(F.pad(x, (pl, pr)), weight, bias, dilation=dilation, groups=groups).

    x: (N, C_in, L) NCL layout, weight: (C_out, C_in // groups, K), bias: (C_out,)."""
    n, c_in, l_in = x.shape
    c_out, c_in_g, ksize = weight.shape
    assert c_in_g * groups == c_in and c_out % groups == 0
    c_out_g = c_out // groups

    if mode == "backward":
        pad_l, pad_r = padding, 0
    elif mode == "forward":
        pad_l, pad_r = 0, padding
    else:
        raise ValueError(mode)

    halo = dilation * (ksize - 1)
    l_out = l_in + pad_l + pad_r - halo
    assert l_out > 0, "output length must be positive"

    # Lane-aligned halo strips read straight from the *unpadded* input.  For a causal
    # ("backward") conv with pad_l == halo only the left strip exists; for "forward" only the
    # right strip; for K == 1 with no padding there is no halo DMA at all.
    hl = _round_up(pad_l, 128) if pad_l > 0 else 0
    hr = _round_up(halo - pad_l, 128) if halo > pad_l else 0

    # Dispatch: per-group matmuls when every group fills the MXU reasonably and all slices
    # stay sublane aligned; otherwise one block-diagonal matmul per tile.
    grouped = (groups > 1 and groups <= 16 and ksize * c_in_g >= 32
               and c_out_g % 8 == 0 and c_in_g % 8 == 0)

    if grouped:
        # (C_out, K*C_in_g); column k*C_in_g + ci matches the per-group im2col stacking.
        w_arg = jnp.transpose(weight, (0, 2, 1)).reshape(c_out, ksize * c_in_g)
    else:
        if groups == 1:
            w_full = weight
        else:
            w_full = jnp.zeros((c_out, c_in, ksize), weight.dtype)
            for g in range(groups):
                w_full = w_full.at[g * c_out_g:(g + 1) * c_out_g,
                                   g * c_in_g:(g + 1) * c_in_g, :].set(
                    weight[g * c_out_g:(g + 1) * c_out_g])
        # (C_out, K*C_in); column k*C_in + ci matches the full im2col stacking.
        w_arg = jnp.transpose(w_full, (0, 2, 1)).reshape(c_out, ksize * w_full.shape[1])
    b_arg = bias.astype(jnp.float32).reshape(c_out, 1)

    itemsize = jnp.dtype(x.dtype).itemsize
    out_item = itemsize
    w_bytes = int(w_arg.size) * jnp.dtype(w_arg.dtype).itemsize + c_out * 4

    # Generation-aware VMEM budget (v7x: 64 MiB physical, v5e/v6e: 128 MiB); account for the
    # double-buffered pipeline buffers AND the in-kernel intermediates.
    try:
        phys_vmem = int(pltpu.get_tpu_info().vmem_capacity_bytes)
    except Exception:  # pragma: no cover - interpret mode / exotic backends
        phys_vmem = 64 << 20
    vmem_limit = min(phys_vmem * 3 // 4, 112 << 20)
    budget = vmem_limit // 2

    def _step_bytes(tl_):
        width = hl + tl_ + hr
        bufs = 2 * (itemsize * c_in * width + out_item * c_out * tl_ + w_bytes)
        inter = itemsize * c_in * (width + 2 * ksize * tl_) + 8 * c_out * tl_
        return bufs + inter

    align = 128
    if hl:
        align = math.lcm(align, hl)
    if hr:
        align = math.lcm(align, hr)
    tl = max(align, min(_round_up(max_tile_l, align), _round_up(l_out, align)))
    while tl > align and _step_bytes(tl) > budget:
        tl -= align
    # Very large halos (huge dilation) can bust the budget even at the minimum tile; widen
    # the scoped limit instead of failing outright.
    vmem_limit = max(vmem_limit, min(phys_vmem * 9 // 10, _step_bytes(tl) + (8 << 20)))

    n_tiles = _cdiv(l_out, tl)
    # Do any tiles see lanes outside [0, L) (zero padding or partial edge blocks)?
    need_mask = (pad_l > 0) or (n_tiles * tl + hr > l_in)

    max_main = (l_in - 1) // tl
    in_specs = []
    operands = []
    if hl:
        rl = tl // hl
        max_l = (l_in - 1) // hl
        in_specs.append(pl.BlockSpec(
            (1, c_in, hl), lambda i, j: (i, 0, jnp.clip(j * rl - 1, 0, max_l))))
        operands.append(x)
    in_specs.append(pl.BlockSpec(
        (1, c_in, tl), lambda i, j: (i, 0, jnp.minimum(j, max_main))))
    operands.append(x)
    if hr:
        rr = tl // hr
        max_r = (l_in - 1) // hr
        in_specs.append(pl.BlockSpec(
            (1, c_in, hr), lambda i, j: (i, 0, jnp.minimum((j + 1) * rr, max_r))))
        operands.append(x)
    in_specs.append(pl.BlockSpec(w_arg.shape, lambda i, j: (0, 0)))
    in_specs.append(pl.BlockSpec((c_out, 1), lambda i, j: (0, 0)))
    operands += [w_arg, b_arg]

    kernel = functools.partial(
        _conv1d_kernel, ksize=ksize, dilation=dilation, pad_l=pad_l, hl=hl, hr=hr,
        tl=tl, l_in=l_in, need_mask=need_mask, groups=groups, c_in_g=c_in_g,
        c_out_g=c_out_g, grouped=grouped, has_l=bool(hl), has_r=bool(hr))

    flops = 2 * n * l_out * c_out * c_in_g * ksize
    bytes_accessed = (n * c_in * n_tiles * (tl + hl + hr) * itemsize
                      + n * c_out * l_out * out_item + w_bytes)

    return pl.pallas_call(
        kernel,
        out_shape=jax.ShapeDtypeStruct((n, c_out, l_out), x.dtype),
        grid=(n, n_tiles),
        in_specs=in_specs,
        out_specs=pl.BlockSpec((1, c_out, tl), lambda i, j: (i, 0, j)),
        compiler_params=pltpu.CompilerParams(
            dimension_semantics=("parallel", "parallel"),
            vmem_limit_bytes=int(vmem_limit)),
        cost_estimate=pl.CostEstimate(
            flops=int(flops), transcendentals=0, bytes_accessed=int(bytes_accessed)),
    )(*operands)


if __name__ == "__main__":
    def run_case(key, *, n, c_in, c_out, ksize, dilation, groups, padding, mode, L):
        kx, kw, kb = jax.random.split(key, 3)
        kk = float(np.sqrt(1.0 / (c_in * ksize)))
        weight = jax.random.uniform(kw, (c_out, c_in // groups, ksize),
                                    minval=-kk, maxval=kk, dtype=jnp.float32)
        bias = jax.random.uniform(kb, (c_out,), minval=-kk, maxval=kk, dtype=jnp.float32)
        x = jax.random.normal(kx, (n, c_in, L), dtype=jnp.float32)

        out = jax.block_until_ready(custom_conv1d(
            x, weight, bias, padding=padding, dilation=dilation, mode=mode, groups=groups))

        pads = (padding, 0) if mode == "backward" else (0, padding)
        ref = lax.conv_general_dilated(
            x, weight, window_strides=(1,), padding=(pads,), rhs_dilation=(dilation,),
            dimension_numbers=("NCH", "OIH", "NCH"), feature_group_count=groups,
            precision=lax.Precision.HIGHEST) + bias[None, :, None]
        np.testing.assert_allclose(np.asarray(out), np.asarray(ref), rtol=1e-4, atol=1e-4)
        return out

    key = jax.random.PRNGKey(0)
    k1, k2, k3 = jax.random.split(key, 3)

    # Module config (tiny grouped channels): causal ("backward") padding, dilated, grouped
    # -> fused block-diagonal single-matmul path, left halo strip only.
    o1 = run_case(k1, n=2, c_in=4, c_out=8, ksize=3, dilation=2, groups=2,
                  padding=(3 - 1) * 2, mode="backward", L=16)
    assert o1.shape == (2, 8, 16)

    # Larger channels, "forward" (anti-causal) padding -> dense MXU matmul path, right halo
    # strip only, partial edge tile handled by the in-kernel mask (no jnp.pad, no out slice).
    o2 = run_case(k2, n=2, c_in=32, c_out=32, ksize=3, dilation=1, groups=1,
                  padding=2, mode="forward", L=600)
    assert o2.shape == (2, 32, 600)

    # Grouped with MXU-sized groups -> per-group matmul path with direct per-group stores.
    o3 = run_case(k3, n=2, c_in=32, c_out=32, ksize=3, dilation=4, groups=2,
                  padding=(3 - 1) * 4, mode="backward", L=300)
    assert o3.shape == (2, 32, 300)

    print("KERNEL_OK")
</pallas_src>

<mosaic_0001>
module attributes {stable_mosaic.version = 11 : i64} {
  func.func @_conv1d_kernel(%arg0: i32, %arg1: i32, %arg2: memref<1x4x128xf32, #tpu.memory_space<vmem>>, %arg3: memref<1x4x128xf32, #tpu.memory_space<vmem>>, %arg4: memref<8x12xf32, #tpu.memory_space<vmem>>, %arg5: memref<8x1xf32, #tpu.memory_space<vmem>>, %arg6: memref<1x8x128xf32, #tpu.memory_space<vmem>>) attributes {dimension_semantics = [#tpu.dimension_semantics<parallel>, #tpu.dimension_semantics<parallel>], iteration_bounds = array<i64: 2, 1>, scalar_prefetch = 0 : i64, scratch_operands = 0 : i64, tpu.core_type = #tpu.core_type<tc>, window_params = [{transform_indices = @transform_0, window_bounds = array<i64: 1, 4, 128>}, {transform_indices = @transform_1, window_bounds = array<i64: 1, 4, 128>}, {pipeline_mode = #tpu.pipeline_mode<synchronous>, transform_indices = @transform_2, window_bounds = array<i64: 8, 12>}, {pipeline_mode = #tpu.pipeline_mode<synchronous>, transform_indices = @transform_3, window_bounds = array<i64: 8, 1>}, {transform_indices = @transform_4, window_bounds = array<i64: 1, 8, 128>}]} {
    %c0 = arith.constant 0 : index
    %c0_0 = arith.constant 0 : index
    %c0_1 = arith.constant 0 : index
    %0 = vector.load %arg2[%c0, %c0_0, %c0_1] : memref<1x4x128xf32, #tpu.memory_space<vmem>>, vector<1x4x128xf32>
    %1 = vector.shape_cast %0 : vector<1x4x128xf32> to vector<4x128xf32>
    %c0_2 = arith.constant 0 : index
    %c0_3 = arith.constant 0 : index
    %c0_4 = arith.constant 0 : index
    %2 = vector.load %arg3[%c0_2, %c0_3, %c0_4] : memref<1x4x128xf32, #tpu.memory_space<vmem>>, vector<1x4x128xf32>
    %3 = vector.shape_cast %2 : vector<1x4x128xf32> to vector<4x128xf32>
    %4 = tpu.concatenate %1, %3 in 1 : vector<4x128xf32>, vector<4x128xf32> -> vector<4x256xf32>
    %c128_i32 = arith.constant 128 : i32
    %5 = arith.muli %arg1, %c128_i32 : i32
    %c128_i32_5 = arith.constant 128 : i32
    %6 = arith.subi %5, %c128_i32_5 : i32
    %7 = tpu.iota {dimensions = array<i32: 1>} : vector<1x256xi32>
    %8 = vector.broadcast %6 : i32 to vector<1x256xi32>
    %9 = arith.addi %8, %7 : vector<1x256xi32>
    %c0_i32 = arith.constant 0 : i32
    %10 = vector.broadcast %c0_i32 : i32 to vector<1x256xi32>
    %11 = arith.cmpi sge, %9, %10 : vector<1x256xi32>
    %c16_i32 = arith.constant 16 : i32
    %12 = vector.broadcast %c16_i32 : i32 to vector<1x256xi32>
    %13 = arith.cmpi slt, %9, %12 : vector<1x256xi32>
    %14 = arith.andi %11, %13 : vector<1x256xi1>
    %cst = arith.constant 0.000000e+00 : f32
    %15 = vector.shape_cast %14 : vector<1x256xi1> to vector<1x256xi1>
    %16 = vector.broadcast %15 : vector<1x256xi1> to vector<4x256xi1>
    %17 = vector.broadcast %cst : f32 to vector<4x256xf32>
    %18 = arith.select %16, %4, %17 : vector<4x256xi1>, vector<4x256xf32>
    %c132_i32 = arith.constant 132 : i32
    %19 = tpu.dynamic_rotate %18 by %c132_i32 dim 1 : vector<4x256xf32>, i32 -> vector<4x256xf32>
    %20 = vector.extract_strided_slice %19 {offsets = [0, 0], sizes = [4, 128], strides = [1, 1]} : vector<4x256xf32> to vector<4x128xf32>
    %c130_i32 = arith.constant 130 : i32
    %21 = tpu.dynamic_rotate %18 by %c130_i32 dim 1 : vector<4x256xf32>, i32 -> vector<4x256xf32>
    %22 = vector.extract_strided_slice %21 {offsets = [0, 0], sizes = [4, 128], strides = [1, 1]} : vector<4x256xf32> to vector<4x128xf32>
    %23 = vector.extract_strided_slice %18 {offsets = [0, 128], sizes = [4, 128], strides = [1, 1]} : vector<4x256xf32> to vector<4x128xf32>
    %24 = tpu.concatenate %20, %22, %23 in 0 : vector<4x128xf32>, vector<4x128xf32>, vector<4x128xf32> -> vector<12x128xf32>
    %c0_6 = arith.constant 0 : index
    %c0_7 = arith.constant 0 : index
    %25 = vector.load %arg4[%c0_6, %c0_7] : memref<8x12xf32, #tpu.memory_space<vmem>>, vector<8x12xf32>
    %cst_8 = arith.constant dense<0.000000e+00> : vector<8x128xf32>
    %26 = tpu.matmul %25, %24, %cst_8 {dimension_numbers = #tpu.dot_dimension_numbers<[1], [0], [0], [1], [0, 0, 1, 1], [], []>} : vector<8x12xf32>, vector<12x128xf32>, vector<8x128xf32> -> vector<8x128xf32>
    %c0_9 = arith.constant 0 : index
    %c0_10 = arith.constant 0 : index
    %27 = vector.load %arg5[%c0_9, %c0_10] : memref<8x1xf32, #tpu.memory_space<vmem>>, vector<8x1xf32>
    %28 = vector.broadcast %27 : vector<8x1xf32> to vector<8x128xf32>
    %29 = arith.addf %26, %28 : vector<8x128xf32>
    %c0_11 = arith.constant 0 : index
    %c0_12 = arith.constant 0 : index
    %c0_13 = arith.constant 0 : index
    %30 = vector.load %arg6[%c0_11, %c0_12, %c0_13] : memref<1x8x128xf32, #tpu.memory_space<vmem>>, vector<1x8x128xf32>
    %31 = vector.shape_cast %30 : vector<1x8x128xf32> to vector<8x128xf32>
    %32 = vector.shape_cast %29 : vector<8x128xf32> to vector<1x8x128xf32>
    tpu.vector_store %arg6[%c0_11, %c0_12, %c0_13], %32 {strides = array<i32>} : memref<1x8x128xf32, #tpu.memory_space<vmem>>, vector<1x8x128xf32>,
    return
  }
  func.func @transform_0(%arg0: i32, %arg1: i32) -> (i32, i32, i32) {
    %c1_i32 = arith.constant 1 : i32
    %0 = arith.muli %arg1, %c1_i32 : i32
    %c1_i32_0 = arith.constant 1 : i32
    %1 = arith.subi %0, %c1_i32_0 : i32
    %c0_i32 = arith.constant 0 : i32
    %c0_i32_1 = arith.constant 0 : i32
    %2 = arith.maxsi %c0_i32, %1 : i32
    %3 = arith.minsi %c0_i32_1, %2 : i32
    %c0_i32_2 = arith.constant 0 : i32
    %c0_i32_3 = arith.constant 0 : i32
    return %arg0, %c0_i32_2, %3 : i32, i32, i32
  }
  func.func @transform_1(%arg0: i32, %arg1: i32) -> (i32, i32, i32) {
    %c0_i32 = arith.constant 0 : i32
    %0 = arith.minsi %arg1, %c0_i32 : i32
    %c0_i32_0 = arith.constant 0 : i32
    %c0_i32_1 = arith.constant 0 : i32
    return %arg0, %c0_i32_0, %0 : i32, i32, i32
  }
  func.func @transform_2(%arg0: i32, %arg1: i32) -> (i32, i32) {
    %c0_i32 = arith.constant 0 : i32
    %c0_i32_0 = arith.constant 0 : i32
    %c0_i32_1 = arith.constant 0 : i32
    return %c0_i32, %c0_i32_0 : i32, i32
  }
  func.func @transform_3(%arg0: i32, %arg1: i32) -> (i32, i32) {
    %c0_i32 = arith.constant 0 : i32
    %c0_i32_0 = arith.constant 0 : i32
    %c0_i32_1 = arith.constant 0 : i32
    return %c0_i32, %c0_i32_0 : i32, i32
  }
  func.func @transform_4(%arg0: i32, %arg1: i32) -> (i32, i32, i32) {
    %c0_i32 = arith.constant 0 : i32
    %c0_i32_0 = arith.constant 0 : i32
    return %arg0, %c0_i32, %arg1 : i32, i32, i32
  }
}

</mosaic_0001>

<llo_original>
// kernel: tpu_custom_call.1
$region0: #{tpu_custom_call.1}
  #allocation0 [shape = 'u32[]', space=smem, size = 0x4, offset = 0x4, fixed_abs, tag = 'smem constant byte address 0x4 - core index']
  #allocation1 [shape = 'u32[144,128]{1,0:T(1,128)}', space=vmem, size = 0x12000, scoped, tag = 'internal scratch']
  %s0 = inlined_call_operand.vmem [shape: f32[2,4,16], index: 0, kind: input, shape index: {}]
  %s1 = inlined_call_operand.hbm [shape: f32[2,4,16], index: 1, kind: input, shape index: {}]
  %s2 = inlined_call_operand.vmem [shape: f32[8,12], index: 2, kind: input, shape index: {}]
  %s3 = inlined_call_operand.vmem [shape: f32[8,1], index: 3, kind: input, shape index: {}]
  %s4 = inlined_call_operand.hbm [shape: f32[2,8,16], index: 4, kind: output, shape index: {}]
  %s5 = sld [smem:[#allocation0]]
  $region53: #{tpu_custom_call.1} parent=0
    _
  %s7 = ssub.s32 1, %s5
  %s8 = scalar_select 0, %s7, %s5
  $region1: #{tpu_custom_call.1} parent=0
    #allocation2 [shape = 'u8[4096]{0}', space=vmem, size = 0x1000, scoped, tag = 'input window, operand 1']
    #allocation3 [shape = 's32[2]{0}', space=sflag, size = 0x8, scoped, tag = 'scoped memory for tpu_custom_call.1']
    #allocation4 [shape = 's32[2]{0}', space=sflag, size = 0x8, scoped, tag = 'scoped memory for tpu_custom_call.1']
    #allocation5 [shape = 'u8[8192]{0}', space=vmem, size = 0x2000, scoped, tag = 'output window, operand 0']
    %9 = vsyncpa [#allocation3], 0
    %s10 = scalar_lea.sflag [#allocation3], 1
    %11 = vsyncpa %s10, 0
    %12 = vsyncpa [#allocation4], 0
    %s13 = scalar_lea.sflag [#allocation4], 1
    %14 = vsyncpa %s13, 0
    loop: start=0, step=1, limit=4
    $region2: #{tpu_custom_call.1} parent=1 // loop_pre_header
      _
    $region3: #{tpu_custom_call.1} parent=1 // loop_header
      %s16 = sphi 0, %s20
      %p17 = scmp.ge.s32.totalorder %s16, 4
      %s23 = sphi 0, %s35
      %s24 = sphi 0, %s31
      %s25 = sphi 0, %s23
      %s26 = sphi 0, %s24
      %s27 = sphi 0, %s25
      %s28 = sphi 0, %s26
      %s50 = sphi 0, %s52
      %s53 = sphi 0, %s50
      %s54 = sphi 0, %s53
      %s70 = sphi 0, %s54
      %s82 = sphi 0, %s84
      %s85 = sphi 0, %s82
      %s86 = sphi 0, %s85
      %s102 = sphi 0, %s86
      %s106 = sphi 0, %s106
      %s108 = sphi 0, %s106
      %s109 = sphi 0, %s108
      %s123 = sphi 0, %s109
      %s127 = sphi 0, %s127
      %s129 = sphi 0, %s127
      %s130 = sphi 0, %s129
      %s144 = sphi 0, %s130
      %s152 = sphi 0, %s154
      %s155 = sphi 0, %s152
      %s156 = sphi 0, %s155
      %s172 = sphi 0, %s156
    $region4: #{tpu_custom_call.1} parent=1 // loop_header_branch
      %19 = sbr.rel (%p17) target = $region8
    $region5: #{tpu_custom_call.1} parent=1 // loop_body
      %s21 = ssub.s32 %s16, 1
      %s22 = ssub.s32 %s16, 2
      %s29 = sadd.s32 1, %s24
      %p30 = scmp.ge.s32.totalorder %s29, 1
      %s31 = scalar_select %p30, 0, %s29
      %s32 = sadd.s32 1, %s23
      %s33 = scalar_select %p30, %s32, %s23
      %p34 = scmp.ge.s32.totalorder %s33, 2
      %s35 = scalar_select %p34, 0, %s33
      %s36 = ssub.s32 %s24, 1
      %p37 = scmp.gt.s32.totalorder %s36, 0
      %s38 = scalar_select %p37, %s36, 0
      %p39 = scmp.lt.s32.totalorder %s38, 0
      %s40 = scalar_select %p39, %s38, 0
      %s41 = ssub.s32 %s31, 1
      %p42 = scmp.gt.s32.totalorder %s41, 0
      %s43 = scalar_select %p42, %s41, 0
      %p44 = scmp.lt.s32.totalorder %s43, 0
      %s45 = scalar_select %p44, %s43, 0
      %s46 = ssub.s32 %s23, %s35
      %s47 = ssub.s32 %s40, %s45
      %s48 = sor.u32 %s46, %s47
      %p49 = scmp.eq.s32.totalorder %s48, 0
      %s51 = sadd.s32 %s50, 1
      %s52 = scalar_select %p49, %s50, %s51
      %p55 = pneg %p49
      %p56 = scmp.eq.s32.totalorder %s16, 1
      %p57 = por %p55, %p56
      %p58 = scmp.ne.s32.totalorder %s50, %s53
      %p59 = scmp.eq.s32.totalorder %s16, 0
      %p60 = por %p58, %p59
      %p61 = scmp.ne.s32.totalorder %s50, %s53
      %p62 = scmp.eq.s32.totalorder %s21, 1
      %p63 = por %p61, %p62
      %p64 = scmp.ne.s32.totalorder %s53, %s54
      %p65 = scmp.eq.s32.totalorder %s21, 0
      %p66 = por %p64, %p65
      %p67 = scmp.ne.s32.totalorder %s53, %s54
      %p68 = scmp.eq.s32.totalorder %s22, 1
      %p69 = por %p67, %p68
      %p71 = scmp.ne.s32.totalorder %s54, %s70
      %p72 = scmp.eq.s32.totalorder %s22, 0
      %p73 = por %p71, %p72
      %p74 = scmp.lt.s32.totalorder %s24, 0
      %s75 = scalar_select %p74, %s24, 0
      %p76 = scmp.lt.s32.totalorder %s31, 0
      %s77 = scalar_select %p76, %s31, 0
      %s78 = ssub.s32 %s23, %s35
      %s79 = ssub.s32 %s75, %s77
      %s80 = sor.u32 %s78, %s79
      %p81 = scmp.eq.s32.totalorder %s80, 0
      %s83 = sadd.s32 %s82, 1
      %s84 = scalar_select %p81, %s82, %s83
      %p87 = pneg %p81
      %p88 = scmp.eq.s32.totalorder %s16, 1
      %p89 = por %p87, %p88
      %p90 = scmp.ne.s32.totalorder %s82, %s85
      %p91 = scmp.eq.s32.totalorder %s16, 0
      %p92 = por %p90, %p91
      %p93 = scmp.ne.s32.totalorder %s82, %s85
      %p94 = scmp.eq.s32.totalorder %s21, 1
      %p95 = por %p93, %p94
      %p96 = scmp.ne.s32.totalorder %s85, %s86
      %p97 = scmp.eq.s32.totalorder %s21, 0
      %p98 = por %p96, %p97
      %p99 = scmp.ne.s32.totalorder %s85, %s86
      %p100 = scmp.eq.s32.totalorder %s22, 1
      %p101 = por %p99, %p100
      %p103 = scmp.ne.s32.totalorder %s86, %s102
      %p104 = scmp.eq.s32.totalorder %s22, 0
      %p105 = por %p103, %p104
      %s107 = sadd.s32 %s106, 1
      %p110 = scmp.eq.s32.totalorder %s16, 1
      %p111 = scmp.ne.s32.totalorder %s106, %s108
      %p112 = scmp.eq.s32.totalorder %s16, 0
      %p113 = por %p111, %p112
      %p114 = scmp.ne.s32.totalorder %s106, %s108
      %p115 = scmp.eq.s32.totalorder %s21, 1
      %p116 = por %p114, %p115
      %p117 = scmp.ne.s32.totalorder %s108, %s109
      %p118 = scmp.eq.s32.totalorder %s21, 0
      %p119 = por %p117, %p118
      %p120 = scmp.ne.s32.totalorder %s108, %s109
      %p121 = scmp.eq.s32.totalorder %s22, 1
      %p122 = por %p120, %p121
      %p124 = scmp.ne.s32.totalorder %s109, %s123
      %p125 = scmp.eq.s32.totalorder %s22, 0
      %p126 = por %p124, %p125
      %s128 = sadd.s32 %s127, 1
      %p131 = scmp.eq.s32.totalorder %s16, 1
      %p132 = scmp.ne.s32.totalorder %s127, %s129
      %p133 = scmp.eq.s32.totalorder %s16, 0
      %p134 = por %p132, %p133
      %p135 = scmp.ne.s32.totalorder %s127, %s129
      %p136 = scmp.eq.s32.totalorder %s21, 1
      %p137 = por %p135, %p136
      %p138 = scmp.ne.s32.totalorder %s129, %s130
      %p139 = scmp.eq.s32.totalorder %s21, 0
      %p140 = por %p138, %p139
      %p141 = scmp.ne.s32.totalorder %s129, %s130
      %p142 = scmp.eq.s32.totalorder %s22, 1
      %p143 = por %p141, %p142
      %p145 = scmp.ne.s32.totalorder %s130, %s144
      %p146 = scmp.eq.s32.totalorder %s22, 0
      %p147 = por %p145, %p146
      %s148 = ssub.s32 %s23, %s35
      %s149 = ssub.s32 %s24, %s31
      %s150 = sor.u32 %s148, %s149
      %p151 = scmp.eq.s32.totalorder %s150, 0
      %s153 = sadd.s32 %s152, 1
      %s154 = scalar_select %p151, %s152, %s153
      %p157 = pneg %p151
      %p158 = scmp.eq.s32.totalorder %s16, 1
      %p159 = por %p157, %p158
      %p160 = scmp.ne.s32.totalorder %s152, %s155
      %p161 = scmp.eq.s32.totalorder %s16, 0
      %p162 = por %p160, %p161
      %p163 = scmp.ne.s32.totalorder %s152, %s155
      %p164 = scmp.eq.s32.totalorder %s21, 1
      %p165 = por %p163, %p164
      %p166 = scmp.ne.s32.totalorder %s155, %s156
      %p167 = scmp.eq.s32.totalorder %s21, 0
      %p168 = por %p166, %p167
      %p169 = scmp.ne.s32.totalorder %s155, %s156
      %p170 = scmp.eq.s32.totalorder %s22, 1
      %p171 = por %p169, %p170
      %p173 = scmp.ne.s32.totalorder %s156, %s172
      %p174 = scmp.eq.s32.totalorder %s22, 0
      %p175 = por %p173, %p174
      %p176 = scmp.le.s32.totalorder 1, %s16
      %p177 = scmp.lt.s32.totalorder %s16, 3
      %p178 = pnand %p176, %p177
      %p179 = pneg %p178
      // Predicated region
      $region9: #{tpu_custom_call.1} parent=5 // pred_check
        _
      $region10: #{tpu_custom_call.1} parent=5 // pred_check_branch
        %181 = sbr.rel (%p178) target = $region12
      $region11: #{tpu_custom_call.1} parent=5 // pred_region
        %s182 = ssub.s32 %s16, 1
        // Predicated region
        $region13: #{tpu_custom_call.1} parent=11 // pred_check
          %p183 = pneg %p119
        $region14: #{tpu_custom_call.1} parent=11 // pred_check_branch
          %185 = sbr.rel (%p183) target = $region16
        $region15: #{tpu_custom_call.1} parent=11 // pred_region
          _
        $region16: #{tpu_custom_call.1} parent=11 // pred_fallthru
          _
        // Predicated region
        $region17: #{tpu_custom_call.1} parent=11 // pred_check
          %p186 = pneg %p140
        $region18: #{tpu_custom_call.1} parent=11 // pred_check_branch
          %188 = sbr.rel (%p186) target = $region20
        $region19: #{tpu_custom_call.1} parent=11 // pred_region
          _
        $region20: #{tpu_custom_call.1} parent=11 // pred_fallthru
          _
      $region12: #{tpu_custom_call.1} parent=5 // pred_fallthru
        _
      %p189 = scmp.lt.s32.totalorder %s16, 2
      // Predicated region
      $region21: #{tpu_custom_call.1} parent=5 // pred_check
        %p190 = pneg %p189
      $region22: #{tpu_custom_call.1} parent=5 // pred_check_branch
        %192 = sbr.rel (%p190) target = $region24
      $region23: #{tpu_custom_call.1} parent=5 // pred_region
        // Predicated region
        $region25: #{tpu_custom_call.1} parent=23 // pred_check
          %p193 = pneg %p60
        $region26: #{tpu_custom_call.1} parent=23 // pred_check_branch
          %195 = sbr.rel (%p193) target = $region28
        $region27: #{tpu_custom_call.1} parent=23 // pred_region
          %s196 = ssub.s32 %s24, 1
          %p197 = scmp.gt.s32.totalorder %s196, 0
          %s198 = scalar_select %p197, %s196, 0
          %p199 = scmp.lt.s32.totalorder %s198, 0
          %s200 = scalar_select %p199, %s198, 0
          %p201 = scmp.lt.s32.totalorder %s23, 1
          %s202 = scalar_select %p201, %s23, 1
          %p203 = scmp.lt.s32.totalorder %s200, 0
          %s204 = scalar_select %p203, %s200, 0
          %s205 = sadd.s32 %s204, %s202
          %s206 = smul.addr %s205, 4
          %s207 = scalar_lea.vmem %s0, %s206
          %s208 = ssub.s32 %s24, 1
          %p209 = scmp.gt.s32.totalorder %s208, 0
          %s210 = scalar_select %p209, %s208, 0
          %p211 = scmp.lt.s32.totalorder %s210, 0
          %s212 = scalar_select %p211, %s210, 0
        $region28: #{tpu_custom_call.1} parent=23 // pred_fallthru
          _
        // Predicated region
        $region29: #{tpu_custom_call.1} parent=23 // pred_check
          %p213 = pneg %p92
        $region30: #{tpu_custom_call.1} parent=23 // pred_check_branch
          %215 = sbr.rel (%p213) target = $region32
        $region31: #{tpu_custom_call.1} parent=23 // pred_region
          %s216 = sand.u32 %s82, 1
          %s217 = scalar_lea.sflag [#allocation3], %s216
          %s218 = sand.u32 %s82, 1
          %s219 = smul.addr %s218, 4
          %s220 = scalar_lea.vmem [#allocation2], %s219
          %p221 = scmp.lt.s32.totalorder %s24, 0
          %s222 = scalar_select %p221, %s24, 0
          %s224 = ssub.s32 64, 64
          %225 = vsyncadd %s217, %s224
          %s226 = sadd.s32 %s222, %s23
          %s227 = smul.addr %s226, 64
          %s228 = scalar_lea.hbm %s1, %s227
          %s230 = sshll.u32 %s220, 4
          %s231 = int_to_ptr.vmem [resolvable:$true] %s230
          %233 = dma.hbm_to_vmem [thread:$0]  %s228, 64, %s231, %s217
        $region32: #{tpu_custom_call.1} parent=23 // pred_fallthru
          _
      $region24: #{tpu_custom_call.1} parent=5 // pred_fallthru
        _
      %p234 = scmp.le.s32.totalorder 1, %s16
      %p235 = scmp.lt.s32.totalorder %s16, 3
      %p236 = pnand %p234, %p235
      %p237 = pneg %p236
      // Predicated region
      $region33: #{tpu_custom_call.1} parent=5 // pred_check
        _
      $region34: #{tpu_custom_call.1} parent=5 // pred_check_branch
        %239 = sbr.rel (%p236) target = $region36
      $region35: #{tpu_custom_call.1} parent=5 // pred_region
        %s240 = ssub.s32 %s16, 1
        %s241 = sand.u32 %s85, 1
        %s242 = scalar_lea.sflag [#allocation3], %s241
        %s243 = sand.u32 %s85, 1
        %s244 = smul.addr %s243, 4
        %s245 = scalar_lea.vmem [#allocation2], %s244
        // Predicated region
        $region37: #{tpu_custom_call.1} parent=35 // pred_check
          %p246 = pneg %p98
        $region38: #{tpu_custom_call.1} parent=35 // pred_check_branch
          %248 = sbr.rel (%p246) target = $region40
        $region39: #{tpu_custom_call.1} parent=35 // pred_region
          %249 = dma.done %s242, 64
        $region40: #{tpu_custom_call.1} parent=35 // pred_fallthru
          _
        %s250 = ssub.s32 %s26, 1
        %p251 = scmp.gt.s32.totalorder %s250, 0
        %s252 = scalar_select %p251, %s250, 0
        %p253 = scmp.lt.s32.totalorder %s252, 0
        %s254 = scalar_select %p253, %s252, 0
        %p255 = scmp.lt.s32.totalorder %s25, 1
        %s256 = scalar_select %p255, %s25, 1
        %p257 = scmp.lt.s32.totalorder %s254, 0
        %s258 = scalar_select %p257, %s254, 0
        %s259 = sadd.s32 %s258, %s256
        %s260 = smul.addr %s259, 4
        %s261 = scalar_lea.vmem %s0, %s260
        %p262 = pneg %p66
        %p263 = pneg %p63
        %s264 = sand.u32 %s85, 1
        %s265 = scalar_lea.sflag [#allocation3], %s264
        %s266 = sand.u32 %s85, 1
        %s267 = smul.addr %s266, 4
        %s268 = scalar_lea.vmem [#allocation2], %s267
        %p269 = pneg %p98
        %p270 = pneg %p95
        %p271 = pneg %p119
        %p272 = pneg %p116
        %p273 = pneg %p140
        %p274 = pneg %p137
        %p275 = pneg %p168
        %p276 = pneg %p165
        %s277 = sand.u32 %s155, 1
        %s278 = scalar_lea.sflag [#allocation4], %s277
        %s279 = sand.u32 %s155, 1
        %s280 = smul.addr %s279, 8
        %s281 = scalar_lea.vmem [#allocation5], %s280
        %s282 = ssub.s32 %s26, 1
        %p283 = scmp.gt.s32.totalorder %s282, 0
        %s284 = scalar_select %p283, %s282, 0
        %p285 = scmp.lt.s32.totalorder %s284, 0
        %s286 = scalar_select %p285, %s284, 0
        %p287 = scmp.lt.s32.totalorder %s25, 1
        %s288 = scalar_select %p287, %s25, 1
        %p289 = scmp.lt.s32.totalorder %s286, 0
        %s290 = scalar_select %p289, %s286, 0
        %s291 = sadd.s32 %s290, %s288
        %s292 = smul.addr %s291, 4
        %s293 = scalar_lea.vmem %s0, %s292
        %s294 = ssub.s32 %s26, 1
        %p295 = scmp.gt.s32.totalorder %s294, 0
        %s296 = scalar_select %p295, %s294, 0
        %p297 = scmp.lt.s32.totalorder %s296, 0
        %s298 = scalar_select %p297, %s296, 0
        %p299 = scmp.lt.s32.totalorder %s26, 0
        %s300 = scalar_select %p299, %s26, 0
        %v301 = vld [vmem:[%s293] sm:$0xf]
        %v302 = vld [vmem:[%s245] sm:$0xf]
        %s303 = smul.u32 %s26, 128
        %s304 = ssub.s32 %s303, 128
        %v305 = vlaneseq
        %v306 = vand.u32 %v305, 127
        %v307 = vadd.s32 %v306, 128
        %v308 = vstv %s304
        %v309 = vadd.s32 %v308, %v306
        %v310 = vadd.s32 %v308, %v307
        %vm311 = vcmp.ge.s32.totalorder %v309, 0
        %vm312 = vcmp.ge.s32.totalorder %v310, 0
        %vm313 = vcmp.lt.s32.totalorder %v309, 16
        %vm314 = vcmp.lt.s32.totalorder %v310, 16
        %vm315 = vmand %vm311, %vm313
        %vm316 = vmand %vm312, %vm314
        %v317 = vsel %vm315, 1, 0
        %v318 = vsel %vm316, 1, 0
        %vm319 = vcmp.eq.s32.totalorder %v317, 1
        %vm320 = vcmp.eq.s32.totalorder %v318, 1
        %v321 = vsel %vm319, %v301, 0.0
        %v322 = vsel %vm320, %v302, 0.0
        %323 = vrot.lane.b32.xlu0 %v321, 4
        %v324 = vpop.permute.xlu0 %323
        %325 = vrot.lane.b32.xlu0 %v322, 4
        %v326 = vpop.permute.xlu0 %325
        %vm327 = vcmp.lt.s32.totalorder %v306, 4
        %v328 = vsel %vm327, %v324, %v326
        %329 = vrot.lane.b32.xlu0 %v321, 2
        %v330 = vpop.permute.xlu0 %329
        %331 = vrot.lane.b32.xlu0 %v322, 2
        %v332 = vpop.permute.xlu0 %331
        %vm333 = vcmp.lt.s32.totalorder %v306, 2
        %v334 = vsel %vm333, %v330, %v332
        %v336 = vrot.slane %v334, 4
        %vm338 = vcmask 1043456
        %v339 = vsel %vm338, %v328, %v336
        %v340 = vld [vmem:[%s2] sm:$0xff]
        %v341 = vld [vmem:[%s3] sm:$0xff]
        %343 = vset.pattern.permute.xlu0 0
        %344 = vperm.xlu0 %343, %v341
        %v345 = vpop.permute.xlu0 %344
        %vm347 = vcmask 97280
        %v349 = vsel %vm347, %v340, 0
        %v352 = vsel %vm338, %v322, 0
        %354 = vmatprep.subr.mxu0 0.0
        %355 = vmatpush1.msra.mxu0 %v339
        %356 = vmatprep.subr.mxu0 0.0
        %357 = vmatpush1.msra.mxu0 %v352
        %358 = vmatprep.subr.mxu0 0.0
        %359 = vmatpush1.msra.mxu0 0.0
        %360 = vmatprep.subr.mxu0 0.0
        %361 = vmatpush1.msra.mxu0 0.0
        %362 = vmatprep.subr.mxu0 0.0
        %363 = vmatpush1.msra.mxu0 0.0
        %364 = vmatprep.subr.mxu0 0.0
        %365 = vmatpush1.msra.mxu0 0.0
        %366 = vmatprep.subr.mxu0 0.0
        %367 = vmatpush1.msra.mxu0 0.0
        %368 = vmatprep.subr.mxu0 0.0
        %369 = vmatpush1.msra.mxu0 0.0
        %370 = vmatprep.subr.mxu0 0.0
        %371 = vmatpush1.msra.mxu0 0.0
        %372 = vmatprep.subr.mxu0 0.0
        %373 = vmatpush1.msra.mxu0 0.0
        %374 = vmatprep.subr.mxu0 0.0
        %375 = vmatpush1.msra.mxu0 0.0
        %376 = vmatprep.subr.mxu0 0.0
        %377 = vmatpush1.msra.mxu0 0.0
        %378 = vmatprep.subr.mxu0 0.0
        %379 = vmatpush1.msra.mxu0 0.0
        %380 = vmatprep.subr.mxu0 0.0
        %381 = vmatpush1.msra.mxu0 0.0
        %382 = vmatprep.subr.mxu0 0.0
        %383 = vmatpush1.msra.mxu0 0.0
        %384 = vmatprep.subr.mxu0 0.0
        %385 = vmatpush1.msra.mxu0 0.0
        %386 = vmatprep.subr.mxu0 0.0
        %387 = vmatpush1.msra.mxu0 0.0
        %388 = vmatprep.subr.mxu0 0.0
        %389 = vmatpush1.msra.mxu0 0.0
        %390 = vmatprep.subr.mxu0 0.0
        %391 = vmatpush1.msra.mxu0 0.0
        %392 = vmatprep.subr.mxu0 0.0
        %393 = vmatpush1.msra.mxu0 0.0
        %394 = vmatprep.subr.mxu0 0.0
        %395 = vmatpush1.msra.mxu0 0.0
        %396 = vmatprep.subr.mxu0 0.0
        %397 = vmatpush1.msra.mxu0 0.0
        %398 = vmatprep.subr.mxu0 0.0
        %399 = vmatpush1.msra.mxu0 0.0
        %400 = vmatprep.subr.mxu0 0.0
        %401 = vmatpush1.msra.mxu0 0.0
        %402 = vmatprep.subr.mxu0 0.0
        %403 = vmatpush1.msra.mxu0 0.0
        %404 = vmatprep.subr.mxu0 0.0
        %405 = vmatpush1.msra.mxu0 0.0
        %406 = vmatprep.subr.mxu0 0.0
        %407 = vmatpush1.msra.mxu0 0.0
        %408 = vmatprep.subr.mxu0 0.0
        %409 = vmatpush1.msra.mxu0 0.0
        %410 = vmatprep.subr.mxu0 0.0
        %411 = vmatpush1.msra.mxu0 0.0
        %412 = vmatprep.subr.mxu0 0.0
        %413 = vmatpush1.msra.mxu0 0.0
        %414 = vmatprep.subr.mxu0 0.0
        %415 = vmatpush1.msra.mxu0 0.0
        %416 = vmatprep.subr.mxu0 0.0
        %417 = vmatpush1.msra.mxu0 0.0
        %418 = vmatprep.mubr.f32.mxu0 0.0
        %419 = vmatmul.mubr.f32.gmra.mrb[0].mxu0 %v349
        %v420 = vpop.f32.mrb[0].mxu0
        %v421 = vadd.f32 %v345, %v420
        %v422 = vpop.f32.mrb[0].mxu0
        %423 = vdwg.mxu0
        %424 = vst [vmem:[%s281] sm:$0xff] %v421
        %s425 = sand.u32 %s155, 1
        %s426 = scalar_lea.sflag [#allocation4], %s425
        %s427 = sand.u32 %s155, 1
        %s428 = smul.addr %s427, 8
        %s429 = scalar_lea.vmem [#allocation5], %s428
        // Predicated region
        $region41: #{tpu_custom_call.1} parent=35 // pred_check
          %p430 = pneg %p165
        $region42: #{tpu_custom_call.1} parent=35 // pred_check_branch
          %432 = sbr.rel (%p430) target = $region44
        $region43: #{tpu_custom_call.1} parent=35 // pred_region
          %s434 = ssub.s32 128, 128
          %435 = vsyncadd %s426, %s434
          %s436 = sadd.s32 %s26, %s25
          %s437 = smul.addr %s436, 128
          %s438 = scalar_lea.hbm %s4, %s437
          %s440 = sshll.u32 %s429, 4
          %s441 = int_to_ptr.vmem [resolvable:$true] %s440
          %443 = dma.vmem_to_hbm [thread:$0]  %s441, 128, %s438, %s426
        $region44: #{tpu_custom_call.1} parent=35 // pred_fallthru
          _
      $region36: #{tpu_custom_call.1} parent=5 // pred_fallthru
        _
      %p444 = scmp.le.s32.totalorder 2, %s16
      // Predicated region
      $region45: #{tpu_custom_call.1} parent=5 // pred_check
        %p445 = pneg %p444
      $region46: #{tpu_custom_call.1} parent=5 // pred_check_branch
        %447 = sbr.rel (%p445) target = $region48
      $region47: #{tpu_custom_call.1} parent=5 // pred_region
        %s448 = ssub.s32 %s16, 2
        // Predicated region
        $region49: #{tpu_custom_call.1} parent=47 // pred_check
          %p449 = pneg %p171
        $region50: #{tpu_custom_call.1} parent=47 // pred_check_branch
          %451 = sbr.rel (%p449) target = $region52
        $region51: #{tpu_custom_call.1} parent=47 // pred_region
          %s452 = sand.u32 %s156, 1
          %s453 = scalar_lea.sflag [#allocation4], %s452
          %s454 = sand.u32 %s156, 1
          %s455 = smul.addr %s454, 8
          %s456 = scalar_lea.vmem [#allocation5], %s455
          %457 = dma.done %s453, 128
        $region52: #{tpu_custom_call.1} parent=47 // pred_fallthru
          _
      $region48: #{tpu_custom_call.1} parent=5 // pred_fallthru
        _
    $region6: #{tpu_custom_call.1} parent=1 // loop_footer
      %s20 = sadd.s32 1, %s16
    $region7: #{tpu_custom_call.1} parent=1 // loop_footer_branch
      %15 = sbr.rel target = $region3
    $region8: #{tpu_custom_call.1} parent=1 // loop_exit
      _
    %458 = vsyncpa [#allocation3], 1
    %s459 = scalar_lea.sflag [#allocation3], 1
    %460 = vsyncpa %s459, 1
    %461 = vsyncpa [#allocation4], 1
    %s462 = scalar_lea.sflag [#allocation4], 1
    %463 = vsyncpa %s462, 1

</llo_original>
